<compile_context>
chip_gen: v6e
topology: v6e:2x2x1
jax: 0.10.0
libtpu: 0.0.40
codegen_flags: <defaults>
</compile_context>

<pallas_src>
import functools

import jax
import jax.numpy as jnp
from jax import lax
from jax.experimental import pallas as pl
from jax.experimental.pallas import tpu as pltpu


def _fused_gcn_kernel(out_dim, support_ref, adj_ref, b_ref, out_ref):
    # One MXU matmul per row tile: bf16 adj tile [tn, N] @ resident bf16 fused
    # support [N, 2*out_dim], accumulated in f32 on the MXU.
    acc = jnp.dot(adj_ref[...], support_ref[...],
                  preferred_element_type=jnp.float32)
    out = acc + b_ref[...]            # bias + all epilogue math in f32 (v5e-safe)

    # Epilogue on the full 128-lane slab; a lane mask selects the loc half
    # (clamp) vs the scale half (softplus + 0.001, clamp max).  Computing both
    # branches on the whole slab keeps vregs full and avoids sub-128-lane
    # slices; the extra exp/log1p lands on the otherwise-idle EUP slot.
    col = lax.broadcasted_iota(jnp.int32, out.shape, dimension=1)
    loc_val = jnp.clip(out, -100.0, 100.0)
    # torch softplus (beta=1, threshold=20): x if x > 20 else log1p(exp(x))
    sp = jnp.where(out > 20.0, out,
                   jnp.log1p(jnp.exp(jnp.minimum(out, 20.0))))
    scale_val = jnp.minimum(sp + 0.001, 100.0)
    out_ref[...] = jnp.where(col < out_dim, loc_val, scale_val).astype(out_ref.dtype)


def _tpu_vmem_capacity_bytes():
    try:
        return int(pltpu.get_tpu_info().vmem_capacity_bytes)
    except Exception:
        return 64 * 1024 * 1024       # conservative fallback (v7x per-core VMEM)


def _plan_tiling(N, out_dim):
    """Pick the adj row tile `tn` and a matching vmem_limit_bytes."""
    cap = _tpu_vmem_capacity_bytes()
    # Working budget for this kernel's tiles: ~cap/4, clipped to [12, 32] MiB
    # (v5e/v6e: 128 MiB physical -> 32 MiB; v7x: 64 MiB -> 16 MiB).
    budget = min(max(cap // 4, 12 << 20), 32 << 20)
    tn_cap = 1024 if cap >= (100 << 20) else 512   # bigger row tiles on v5e/v6e

    two_out = 2 * out_dim
    support_bytes = N * two_out * 2                # resident bf16, single-buffered

    def footprint(tn):
        adj_bytes = 2 * tn * N * 2                 # double-buffered bf16 adj tile
        out_bytes = 2 * tn * two_out * 4           # double-buffered f32 out tile
        return support_bytes + adj_bytes + out_bytes + (256 << 10)

    if N % 8 != 0 or N <= 128:
        tn = N                                     # tiny / odd graphs: one block
    else:
        # 8-aligned divisors of N, largest first, capped per generation.
        divisors = [t for t in range(min(tn_cap, N), 7, -8) if N % t == 0]
        tn = None
        for t in divisors:                         # prefer >= 2 grid steps
            if t <= N // 2 and footprint(t) <= budget:
                tn = t
                break
        if tn is None:
            for t in divisors:
                if footprint(t) <= budget:
                    tn = t
                    break
        if tn is None:                             # nothing fits: smallest tile
            tn = divisors[-1] if divisors else N

    vmem_limit = int(min(max(footprint(tn) + (8 << 20), 32 << 20), (cap * 3) // 4))
    return tn, vmem_limit


@functools.partial(jax.jit, static_argnames=("tn", "vmem_limit_bytes"))
def diag_gcn_net(x, adj, w0, b0, w1, b1, *, tn=None, vmem_limit_bytes=None):
    N, in_dim = x.shape
    out_dim = w0.shape[1]
    if tn is None or vmem_limit_bytes is None:
        auto_tn, auto_vmem = _plan_tiling(N, out_dim)
        tn = auto_tn if tn is None else tn
        vmem_limit_bytes = auto_vmem if vmem_limit_bytes is None else vmem_limit_bytes
    assert N % tn == 0, "node count must be divisible by the row tile"

    # --- layer fusion: one [in_dim, 2*out_dim] weight, one [1, 2*out_dim] bias.
    wcat = jnp.concatenate([w0, w1], axis=1)
    bcat = jnp.concatenate([b0, b1], axis=1).astype(jnp.float32)

    # --- hoist the tiny K=in_dim support matmul out of the grid loop; stream
    #     the fused support and adj into the kernel in bf16 (f32 MXU accum).
    support = jnp.dot(x, wcat, preferred_element_type=jnp.float32)  # [N, 2*out_dim]
    support_bf16 = support.astype(jnp.bfloat16)
    adj_bf16 = adj.astype(jnp.bfloat16)

    grid = (N // tn,)
    rows = lambda i: (i, 0)   # tiled along node rows

    fused = pl.pallas_call(
        functools.partial(_fused_gcn_kernel, out_dim),
        out_shape=jax.ShapeDtypeStruct((N, 2 * out_dim), jnp.float32),
        grid_spec=pltpu.PrefetchScalarGridSpec(
            num_scalar_prefetch=0,
            grid=grid,
            in_specs=[
                # Resident whole-array VMEM operands: copied in once, NOT
                # double-buffered (reviewer's Buffered(1) intent).
                pl.BlockSpec(memory_space=pltpu.MemorySpace.VMEM),   # fused support
                # Streamed (double-buffered) bf16 adj row tile.
                pl.BlockSpec((tn, N), rows),
                pl.BlockSpec(memory_space=pltpu.MemorySpace.VMEM),   # fused bias
            ],
            out_specs=pl.BlockSpec((tn, 2 * out_dim), rows),         # lane-dense slab
        ),
        compiler_params=pltpu.CompilerParams(
            dimension_semantics=("parallel",),
            vmem_limit_bytes=vmem_limit_bytes),
    )(support_bf16, adj_bf16, bcat)

    # Split the fused lane-dense slab back into (loc, scale) in plain XLA.
    # (Downstream code that can consume the fused [N, 2*out_dim] slab directly
    # should do so and skip these two slice copies.)
    return fused[:, :out_dim], fused[:, out_dim:]


def _reference(x, adj, w0, b0, w1, b1):
    out0 = adj @ (x @ w0) + b0
    loc = jnp.clip(out0, -100.0, 100.0)
    out1 = adj @ (x @ w1) + b1
    sp = jnp.where(out1 > 20.0, out1, jnp.log1p(jnp.exp(jnp.minimum(out1, 20.0))))
    scale = jnp.minimum(sp + 0.001, 100.0)
    return loc, scale


if __name__ == "__main__":
    # Small, TPU-friendly shapes: N nodes, in_dim features, out_dim outputs.
    N, in_dim, out_dim = 256, 32, 64

    key = jax.random.PRNGKey(0)
    kx, kadj, kw0, kb0, kw1, kb1 = jax.random.split(key, 6)

    x = jax.random.normal(kx, (N, in_dim), dtype=jnp.float32)

    # Symmetric row-normalized adjacency (dense), deterministic.
    a = (jax.random.uniform(kadj, (N, N)) < 0.1).astype(jnp.float32)
    a = jnp.maximum(a, a.T) + jnp.eye(N, dtype=jnp.float32)
    a = a / jnp.sum(a, axis=1, keepdims=True)

    # GraphConvolution init: uniform(-1/sqrt(out_dim), 1/sqrt(out_dim)).
    bound = 1.0 / jnp.sqrt(jnp.float32(out_dim))
    w0 = jax.random.uniform(kw0, (in_dim, out_dim), minval=-bound, maxval=bound)
    b0 = jax.random.uniform(kb0, (1, out_dim), minval=-bound, maxval=bound)
    w1 = jax.random.uniform(kw1, (in_dim, out_dim), minval=-bound, maxval=bound)
    b1 = jax.random.uniform(kb1, (1, out_dim), minval=-bound, maxval=bound)

    loc, scale = diag_gcn_net(x, a, w0, b0, w1, b1)
    jax.block_until_ready((loc, scale))

    loc_ref, scale_ref = _reference(x, a, w0, b0, w1, b1)
    # bf16 streaming of adj/support (f32 accumulation) -> loosened tolerance.
    assert jnp.allclose(loc, loc_ref, atol=2e-2, rtol=2e-2)
    assert jnp.allclose(scale, scale_ref, atol=2e-2, rtol=2e-2)
    assert bool(jnp.all(scale > 0.0))

    print("KERNEL_OK")
</pallas_src>

<mosaic_0001>
module attributes {stable_mosaic.version = 11 : i64} {
  func.func @_fused_gcn_kernel(%arg0: i32, %arg1: memref<256x128xbf16, #tpu.memory_space<vmem>>, %arg2: memref<128x256xbf16, #tpu.memory_space<vmem>>, %arg3: memref<1x128xf32, #tpu.memory_space<vmem>>, %arg4: memref<128x128xf32, #tpu.memory_space<vmem>>) attributes {dimension_semantics = [#tpu.dimension_semantics<parallel>], iteration_bounds = array<i64: 2>, scalar_prefetch = 0 : i64, scratch_operands = 0 : i64, tpu.core_type = #tpu.core_type<tc>, window_params = [{pipeline_mode = #tpu.pipeline_mode<synchronous>, transform_indices = @transform_0, window_bounds = array<i64: 256, 128>}, {transform_indices = @transform_1, window_bounds = array<i64: 128, 256>}, {pipeline_mode = #tpu.pipeline_mode<synchronous>, transform_indices = @transform_2, window_bounds = array<i64: 1, 128>}, {transform_indices = @transform_3, window_bounds = array<i64: 128, 128>}]} {
    %c0 = arith.constant 0 : index
    %c0_0 = arith.constant 0 : index
    %0 = vector.load %arg2[%c0, %c0_0] : memref<128x256xbf16, #tpu.memory_space<vmem>>, vector<128x256xbf16>
    %c0_1 = arith.constant 0 : index
    %c0_2 = arith.constant 0 : index
    %1 = vector.load %arg1[%c0_1, %c0_2] : memref<256x128xbf16, #tpu.memory_space<vmem>>, vector<256x128xbf16>
    %cst = arith.constant dense<0.000000e+00> : vector<128x128xf32>
    %2 = tpu.matmul %0, %1, %cst {dimension_numbers = #tpu.dot_dimension_numbers<[1], [0], [0], [1], [0, 0, 1, 1], [], []>} : vector<128x256xbf16>, vector<256x128xbf16>, vector<128x128xf32> -> vector<128x128xf32>
    %c0_3 = arith.constant 0 : index
    %c0_4 = arith.constant 0 : index
    %3 = vector.load %arg3[%c0_3, %c0_4] : memref<1x128xf32, #tpu.memory_space<vmem>>, vector<1x128xf32>
    %4 = vector.broadcast %3 : vector<1x128xf32> to vector<128x128xf32>
    %5 = arith.addf %2, %4 : vector<128x128xf32>
    %6 = tpu.iota {dimensions = array<i32: 1>} : vector<128x128xi32>
    %cst_5 = arith.constant -1.000000e+02 : f32
    %cst_6 = arith.constant 1.000000e+02 : f32
    %7 = vector.broadcast %cst_5 : f32 to vector<128x128xf32>
    %8 = arith.maximumf %7, %5 : vector<128x128xf32>
    %9 = vector.broadcast %cst_6 : f32 to vector<128x128xf32>
    %10 = arith.minimumf %9, %8 : vector<128x128xf32>
    %cst_7 = arith.constant 2.000000e+01 : f32
    %11 = vector.broadcast %cst_7 : f32 to vector<128x128xf32>
    %12 = arith.cmpf ogt, %5, %11 : vector<128x128xf32>
    %cst_8 = arith.constant 2.000000e+01 : f32
    %13 = vector.broadcast %cst_8 : f32 to vector<128x128xf32>
    %14 = arith.minimumf %5, %13 : vector<128x128xf32>
    %15 = math.exp %14 : vector<128x128xf32>
    %16 = math.log1p %15 : vector<128x128xf32>
    %17 = arith.select %12, %5, %16 : vector<128x128xi1>, vector<128x128xf32>
    %cst_9 = arith.constant 1.000000e-03 : f32
    %18 = vector.broadcast %cst_9 : f32 to vector<128x128xf32>
    %19 = arith.addf %17, %18 : vector<128x128xf32>
    %cst_10 = arith.constant 1.000000e+02 : f32
    %20 = vector.broadcast %cst_10 : f32 to vector<128x128xf32>
    %21 = arith.minimumf %19, %20 : vector<128x128xf32>
    %c64_i32 = arith.constant 64 : i32
    %22 = vector.broadcast %c64_i32 : i32 to vector<128x128xi32>
    %23 = arith.cmpi slt, %6, %22 : vector<128x128xi32>
    %24 = arith.select %23, %10, %21 : vector<128x128xi1>, vector<128x128xf32>
    %c0_11 = arith.constant 0 : index
    %c0_12 = arith.constant 0 : index
    %25 = vector.load %arg4[%c0_11, %c0_12] : memref<128x128xf32, #tpu.memory_space<vmem>>, vector<128x128xf32>
    tpu.vector_store %arg4[%c0_11, %c0_12], %24 {strides = array<i32>} : memref<128x128xf32, #tpu.memory_space<vmem>>, vector<128x128xf32>,
    return
  }
  func.func @transform_0(%arg0: i32) -> (i32, i32) {
    %c0_i32 = arith.constant 0 : i32
    %c0_i32_0 = arith.constant 0 : i32
    %c0_i32_1 = arith.constant 0 : i32
    return %c0_i32, %c0_i32_0 : i32, i32
  }
  func.func @transform_1(%arg0: i32) -> (i32, i32) {
    %c0_i32 = arith.constant 0 : i32
    %c0_i32_0 = arith.constant 0 : i32
    return %arg0, %c0_i32 : i32, i32
  }
  func.func @transform_2(%arg0: i32) -> (i32, i32) {
    %c0_i32 = arith.constant 0 : i32
    %c0_i32_0 = arith.constant 0 : i32
    %c0_i32_1 = arith.constant 0 : i32
    return %c0_i32, %c0_i32_0 : i32, i32
  }
  func.func @transform_3(%arg0: i32) -> (i32, i32) {
    %c0_i32 = arith.constant 0 : i32
    %c0_i32_0 = arith.constant 0 : i32
    return %arg0, %c0_i32 : i32, i32
  }
}

</mosaic_0001>

<llo_original>
// kernel: diag_gcn_net.1
$region0: #{diag_gcn_net.1}
  #allocation0 [shape = 'u32[]', space=smem, size = 0x4, offset = 0x4, fixed_abs, tag = 'smem constant byte address 0x4 - core index']
  #allocation1 [shape = 'u32[144,128]{1,0:T(1,128)}', space=vmem, size = 0x12000, scoped, tag = 'internal scratch']
  %s0 = inlined_call_operand.vmem [shape: bf16[256,128], index: 0, kind: input, shape index: {}]
  %s1 = inlined_call_operand.vmem [shape: bf16[256,256], index: 1, kind: input, shape index: {}]
  %s2 = inlined_call_operand.vmem [shape: f32[1,128], index: 2, kind: input, shape index: {}]
  %s3 = inlined_call_operand.vmem [shape: f32[256,128], index: 3, kind: output, shape index: {}]
  %s4 = sld [smem:[#allocation0]]
  $region45: #{diag_gcn_net.1} parent=0
    _
  %s6 = ssub.s32 1, %s4
  %s7 = scalar_select 0, %s6, %s4
  loop: start=0, step=1, limit=4
  $region2: #{diag_gcn_net.1} parent=0 // loop_pre_header
    _
  $region3: #{diag_gcn_net.1} parent=0 // loop_header
    %s9 = sphi 0, %s13
    %p10 = scmp.ge.s32.totalorder %s9, 4
    %s17 = sphi 0, %s17
    %s19 = sphi 0, %s17
    %s20 = sphi 0, %s19
    %s34 = sphi 0, %s20
    %s40 = sphi 0, %s42
    %s43 = sphi 0, %s40
    %s44 = sphi 0, %s43
    %s60 = sphi 0, %s44
    %s64 = sphi 0, %s64
    %s66 = sphi 0, %s64
    %s67 = sphi 0, %s66
    %s81 = sphi 0, %s67
    %s87 = sphi 0, %s89
    %s90 = sphi 0, %s87
    %s91 = sphi 0, %s90
    %s107 = sphi 0, %s91
  $region4: #{diag_gcn_net.1} parent=0 // loop_header_branch
    %12 = sbr.rel (%p10) target = $region8
  $region5: #{diag_gcn_net.1} parent=0 // loop_body
    %s14 = ssub.s32 %s9, 1
    %s15 = ssub.s32 %s9, 2
    %s16 = sadd.s32 %s9, 1
    %s18 = sadd.s32 %s17, 1
    %p21 = scmp.eq.s32.totalorder %s9, 1
    %p22 = scmp.ne.s32.totalorder %s17, %s19
    %p23 = scmp.eq.s32.totalorder %s9, 0
    %p24 = por %p22, %p23
    %p25 = scmp.ne.s32.totalorder %s17, %s19
    %p26 = scmp.eq.s32.totalorder %s14, 1
    %p27 = por %p25, %p26
    %p28 = scmp.ne.s32.totalorder %s19, %s20
    %p29 = scmp.eq.s32.totalorder %s14, 0
    %p30 = por %p28, %p29
    %p31 = scmp.ne.s32.totalorder %s19, %s20
    %p32 = scmp.eq.s32.totalorder %s15, 1
    %p33 = por %p31, %p32
    %p35 = scmp.ne.s32.totalorder %s20, %s34
    %p36 = scmp.eq.s32.totalorder %s15, 0
    %p37 = por %p35, %p36
    %s38 = ssub.s32 %s9, %s16
    %p39 = scmp.eq.s32.totalorder %s38, 0
    %s41 = sadd.s32 %s40, 1
    %s42 = scalar_select %p39, %s40, %s41
    %p45 = pneg %p39
    %p46 = scmp.eq.s32.totalorder %s9, 1
    %p47 = por %p45, %p46
    %p48 = scmp.ne.s32.totalorder %s40, %s43
    %p49 = scmp.eq.s32.totalorder %s9, 0
    %p50 = por %p48, %p49
    %p51 = scmp.ne.s32.totalorder %s40, %s43
    %p52 = scmp.eq.s32.totalorder %s14, 1
    %p53 = por %p51, %p52
    %p54 = scmp.ne.s32.totalorder %s43, %s44
    %p55 = scmp.eq.s32.totalorder %s14, 0
    %p56 = por %p54, %p55
    %p57 = scmp.ne.s32.totalorder %s43, %s44
    %p58 = scmp.eq.s32.totalorder %s15, 1
    %p59 = por %p57, %p58
    %p61 = scmp.ne.s32.totalorder %s44, %s60
    %p62 = scmp.eq.s32.totalorder %s15, 0
    %p63 = por %p61, %p62
    %s65 = sadd.s32 %s64, 1
    %p68 = scmp.eq.s32.totalorder %s9, 1
    %p69 = scmp.ne.s32.totalorder %s64, %s66
    %p70 = scmp.eq.s32.totalorder %s9, 0
    %p71 = por %p69, %p70
    %p72 = scmp.ne.s32.totalorder %s64, %s66
    %p73 = scmp.eq.s32.totalorder %s14, 1
    %p74 = por %p72, %p73
    %p75 = scmp.ne.s32.totalorder %s66, %s67
    %p76 = scmp.eq.s32.totalorder %s14, 0
    %p77 = por %p75, %p76
    %p78 = scmp.ne.s32.totalorder %s66, %s67
    %p79 = scmp.eq.s32.totalorder %s15, 1
    %p80 = por %p78, %p79
    %p82 = scmp.ne.s32.totalorder %s67, %s81
    %p83 = scmp.eq.s32.totalorder %s15, 0
    %p84 = por %p82, %p83
    %s85 = ssub.s32 %s9, %s16
    %p86 = scmp.eq.s32.totalorder %s85, 0
    %s88 = sadd.s32 %s87, 1
    %s89 = scalar_select %p86, %s87, %s88
    %p92 = pneg %p86
    %p93 = scmp.eq.s32.totalorder %s9, 1
    %p94 = por %p92, %p93
    %p95 = scmp.ne.s32.totalorder %s87, %s90
    %p96 = scmp.eq.s32.totalorder %s9, 0
    %p97 = por %p95, %p96
    %p98 = scmp.ne.s32.totalorder %s87, %s90
    %p99 = scmp.eq.s32.totalorder %s14, 1
    %p100 = por %p98, %p99
    %p101 = scmp.ne.s32.totalorder %s90, %s91
    %p102 = scmp.eq.s32.totalorder %s14, 0
    %p103 = por %p101, %p102
    %p104 = scmp.ne.s32.totalorder %s90, %s91
    %p105 = scmp.eq.s32.totalorder %s15, 1
    %p106 = por %p104, %p105
    %p108 = scmp.ne.s32.totalorder %s91, %s107
    %p109 = scmp.eq.s32.totalorder %s15, 0
    %p110 = por %p108, %p109
    %p111 = scmp.le.s32.totalorder 1, %s9
    %p112 = scmp.lt.s32.totalorder %s9, 3
    %p113 = pnand %p111, %p112
    %p114 = pneg %p113
    // Predicated region
    $region9: #{diag_gcn_net.1} parent=5 // pred_check
      _
    $region10: #{diag_gcn_net.1} parent=5 // pred_check_branch
      %116 = sbr.rel (%p113) target = $region12
    $region11: #{diag_gcn_net.1} parent=5 // pred_region
      %s117 = ssub.s32 %s9, 1
      // Predicated region
      $region13: #{diag_gcn_net.1} parent=11 // pred_check
        %p118 = pneg %p30
      $region14: #{diag_gcn_net.1} parent=11 // pred_check_branch
        %120 = sbr.rel (%p118) target = $region16
      $region15: #{diag_gcn_net.1} parent=11 // pred_region
        _
      $region16: #{diag_gcn_net.1} parent=11 // pred_fallthru
        _
      // Predicated region
      $region17: #{diag_gcn_net.1} parent=11 // pred_check
        %p121 = pneg %p77
      $region18: #{diag_gcn_net.1} parent=11 // pred_check_branch
        %123 = sbr.rel (%p121) target = $region20
      $region19: #{diag_gcn_net.1} parent=11 // pred_region
        _
      $region20: #{diag_gcn_net.1} parent=11 // pred_fallthru
        _
    $region12: #{diag_gcn_net.1} parent=5 // pred_fallthru
      _
    %p124 = scmp.lt.s32.totalorder %s9, 2
    // Predicated region
    $region21: #{diag_gcn_net.1} parent=5 // pred_check
      %p125 = pneg %p124
    $region22: #{diag_gcn_net.1} parent=5 // pred_check_branch
      %127 = sbr.rel (%p125) target = $region24
    $region23: #{diag_gcn_net.1} parent=5 // pred_region
      // Predicated region
      $region25: #{diag_gcn_net.1} parent=23 // pred_check
        %p128 = pneg %p50
      $region26: #{diag_gcn_net.1} parent=23 // pred_check_branch
        %130 = sbr.rel (%p128) target = $region28
      $region27: #{diag_gcn_net.1} parent=23 // pred_region
        %s131 = smul.u32 16, %s9
        %p132 = scmp.lt.s32.totalorder %s131, 31
        %s133 = scalar_select %p132, %s131, 31
        %s134 = smul.addr %s133, 2
        %s135 = smul.addr %s134, 4
        %s136 = scalar_lea.vmem %s1, %s135
        %s137 = smul.u32 16, %s9
      $region28: #{diag_gcn_net.1} parent=23 // pred_fallthru
        _
    $region24: #{diag_gcn_net.1} parent=5 // pred_fallthru
      _
    %p138 = scmp.le.s32.totalorder 1, %s9
    %p139 = scmp.lt.s32.totalorder %s9, 3
    %p140 = pnand %p138, %p139
    %p141 = pneg %p140
    // Predicated region
    $region29: #{diag_gcn_net.1} parent=5 // pred_check
      _
    $region30: #{diag_gcn_net.1} parent=5 // pred_check_branch
      %143 = sbr.rel (%p140) target = $region32
    $region31: #{diag_gcn_net.1} parent=5 // pred_region
      %s144 = ssub.s32 %s9, 1
      %p145 = pneg %p30
      %p146 = pneg %p27
      %s147 = smul.u32 16, %s14
      %p148 = scmp.lt.s32.totalorder %s147, 31
      %s149 = scalar_select %p148, %s147, 31
      %s150 = smul.addr %s149, 2
      %s151 = smul.addr %s150, 4
      %s152 = scalar_lea.vmem %s1, %s151
      %p153 = pneg %p56
      %p154 = pneg %p53
      %p155 = pneg %p77
      %p156 = pneg %p74
      %p157 = pneg %p103
      %p158 = pneg %p100
      %s159 = smul.u32 16, %s14
      %p160 = scmp.lt.s32.totalorder %s159, 31
      %s161 = scalar_select %p160, %s159, 31
      %s162 = smul.addr %s161, 8
      %s163 = scalar_lea.vmem %s3, %s162
      %s164 = smul.u32 16, %s14
      %p165 = scmp.lt.s32.totalorder %s164, 31
      %s166 = scalar_select %p165, %s164, 31
      %s167 = smul.addr %s166, 2
      %s168 = smul.addr %s167, 4
      %s169 = scalar_lea.vmem %s1, %s168
      %s170 = smul.u32 16, %s14
      %s171 = smul.u32 16, %s14
      %p172 = scmp.lt.s32.totalorder %s171, 31
      %s173 = scalar_select %p172, %s171, 31
      %s174 = smul.addr %s173, 8
      %s175 = scalar_lea.vmem %s3, %s174
      %s176 = smul.u32 16, %s14
      %v178 = vld [vmem:[%s169] sm:$0xff]
      %v179 = vld [vmem:[%s169 + $0x8] sm:$0xff]
      %v180 = vld [vmem:[%s169 + $0x10] sm:$0xff]
      %v181 = vld [vmem:[%s169 + $0x18] sm:$0xff]
      %v182 = vld [vmem:[%s169 + $0x20] sm:$0xff]
      %v183 = vld [vmem:[%s169 + $0x28] sm:$0xff]
      %v184 = vld [vmem:[%s169 + $0x30] sm:$0xff]
      %v185 = vld [vmem:[%s169 + $0x38] sm:$0xff]
      %v186 = vld [vmem:[%s169 + $0x40] sm:$0xff]
      %v187 = vld [vmem:[%s169 + $0x48] sm:$0xff]
      %v188 = vld [vmem:[%s169 + $0x50] sm:$0xff]
      %v189 = vld [vmem:[%s169 + $0x58] sm:$0xff]
      %v190 = vld [vmem:[%s169 + $0x60] sm:$0xff]
      %v191 = vld [vmem:[%s169 + $0x68] sm:$0xff]
      %v192 = vld [vmem:[%s169 + $0x70] sm:$0xff]
      %v193 = vld [vmem:[%s169 + $0x78] sm:$0xff]
      %v194 = vld [vmem:[%s0] sm:$0xf]
      %v195 = vld [vmem:[%s0 + $0x4] sm:$0xf]
      %v196 = vld [vmem:[%s0 + $0x8] sm:$0xf]
      %v197 = vld [vmem:[%s0 + $0xc] sm:$0xf]
      %v198 = vld [vmem:[%s0 + $0x10] sm:$0xf]
      %v199 = vld [vmem:[%s0 + $0x14] sm:$0xf]
      %v200 = vld [vmem:[%s0 + $0x18] sm:$0xf]
      %v201 = vld [vmem:[%s0 + $0x1c] sm:$0xf]
      %v202 = vld [vmem:[%s0 + $0x20] sm:$0xf]
      %v203 = vld [vmem:[%s0 + $0x24] sm:$0xf]
      %v204 = vld [vmem:[%s0 + $0x28] sm:$0xf]
      %v205 = vld [vmem:[%s0 + $0x2c] sm:$0xf]
      %v206 = vld [vmem:[%s0 + $0x30] sm:$0xf]
      %v207 = vld [vmem:[%s0 + $0x34] sm:$0xf]
      %v208 = vld [vmem:[%s0 + $0x38] sm:$0xf]
      %v209 = vld [vmem:[%s0 + $0x3c] sm:$0xf]
      %v210 = vld [vmem:[%s0 + $0x40] sm:$0xf]
      %v211 = vld [vmem:[%s0 + $0x44] sm:$0xf]
      %v212 = vld [vmem:[%s0 + $0x48] sm:$0xf]
      %v213 = vld [vmem:[%s0 + $0x4c] sm:$0xf]
      %v214 = vld [vmem:[%s0 + $0x50] sm:$0xf]
      %v215 = vld [vmem:[%s0 + $0x54] sm:$0xf]
      %v216 = vld [vmem:[%s0 + $0x58] sm:$0xf]
      %v217 = vld [vmem:[%s0 + $0x5c] sm:$0xf]
      %v218 = vld [vmem:[%s0 + $0x60] sm:$0xf]
      %v219 = vld [vmem:[%s0 + $0x64] sm:$0xf]
      %v220 = vld [vmem:[%s0 + $0x68] sm:$0xf]
      %v221 = vld [vmem:[%s0 + $0x6c] sm:$0xf]
      %v222 = vld [vmem:[%s0 + $0x70] sm:$0xf]
      %v223 = vld [vmem:[%s0 + $0x74] sm:$0xf]
      %v224 = vld [vmem:[%s0 + $0x78] sm:$0xf]
      %v225 = vld [vmem:[%s0 + $0x7c] sm:$0xf]
      %v226 = vld [vmem:[%s2] sm:$0x1]
      %v228 = vlaneseq
      %v229 = vshrl.u32 %v228, 7
      %v230 = vsub.s32 0, %v229
      %v231 = vrot.slane %v226, %v230
      %v249 = vunpack.c.l.b16 %v178
      %v250 = vunpack.c.h.b16 %v178
      %v251 = vunpack.c.l.b16 %v179
      %v252 = vunpack.c.h.b16 %v179
      %v253 = vunpack.c.l.b16 %v180
      %v254 = vunpack.c.h.b16 %v180
      %v255 = vunpack.c.l.b16 %v181
      %v256 = vunpack.c.h.b16 %v181
      %v257 = vunpack.c.l.b16 %v182
      %v258 = vunpack.c.h.b16 %v182
      %v259 = vunpack.c.l.b16 %v183
      %v260 = vunpack.c.h.b16 %v183
      %v261 = vunpack.c.l.b16 %v184
      %v262 = vunpack.c.h.b16 %v184
      %v263 = vunpack.c.l.b16 %v185
      %v264 = vunpack.c.h.b16 %v185
      %v265 = vunpack.c.l.b16 %v186
      %v266 = vunpack.c.h.b16 %v186
      %v267 = vunpack.c.l.b16 %v187
      %v268 = vunpack.c.h.b16 %v187
      %v269 = vunpack.c.l.b16 %v188
      %v270 = vunpack.c.h.b16 %v188
      %v271 = vunpack.c.l.b16 %v189
      %v272 = vunpack.c.h.b16 %v189
      %v273 = vunpack.c.l.b16 %v190
      %v274 = vunpack.c.h.b16 %v190
      %v275 = vunpack.c.l.b16 %v191
      %v276 = vunpack.c.h.b16 %v191
      %v277 = vunpack.c.l.b16 %v192
      %v278 = vunpack.c.h.b16 %v192
      %v279 = vunpack.c.l.b16 %v193
      %v280 = vunpack.c.h.b16 %v193
      %v281 = vpack.c.b16 %v251, %v249
      %v282 = vpack.c.b16 %v252, %v250
      %v283 = vpack.c.b16 %v255, %v253
      %v284 = vpack.c.b16 %v256, %v254
      %v285 = vpack.c.b16 %v259, %v257
      %v286 = vpack.c.b16 %v260, %v258
      %v287 = vpack.c.b16 %v263, %v261
      %v288 = vpack.c.b16 %v264, %v262
      %v289 = vpack.c.b16 %v267, %v265
      %v290 = vpack.c.b16 %v268, %v266
      %v291 = vpack.c.b16 %v271, %v269
      %v292 = vpack.c.b16 %v272, %v270
      %v293 = vpack.c.b16 %v275, %v273
      %v294 = vpack.c.b16 %v276, %v274
      %v295 = vpack.c.b16 %v279, %v277
      %v296 = vpack.c.b16 %v280, %v278
      %v345 = vunpack.c.l.b16 %v194
      %v346 = vunpack.c.l.b16 %v195
      %v347 = vunpack.c.l.b16 %v196
      %v348 = vunpack.c.l.b16 %v197
      %v349 = vunpack.c.l.b16 %v198
      %v350 = vunpack.c.l.b16 %v199
      %v351 = vunpack.c.l.b16 %v200
      %v352 = vunpack.c.l.b16 %v201
      %v353 = vunpack.c.l.b16 %v202
      %v354 = vunpack.c.l.b16 %v203
      %v355 = vunpack.c.l.b16 %v204
      %v356 = vunpack.c.l.b16 %v205
      %v357 = vunpack.c.l.b16 %v206
      %v358 = vunpack.c.l.b16 %v207
      %v359 = vunpack.c.l.b16 %v208
      %v360 = vunpack.c.l.b16 %v209
      %v361 = vunpack.c.l.b16 %v210
      %v362 = vunpack.c.l.b16 %v211
      %v363 = vunpack.c.l.b16 %v212
      %v364 = vunpack.c.l.b16 %v213
      %v365 = vunpack.c.l.b16 %v214
      %v366 = vunpack.c.l.b16 %v215
      %v367 = vunpack.c.l.b16 %v216
      %v368 = vunpack.c.l.b16 %v217
      %v369 = vunpack.c.l.b16 %v218
      %v370 = vunpack.c.l.b16 %v219
      %v371 = vunpack.c.l.b16 %v220
      %v372 = vunpack.c.l.b16 %v221
      %v373 = vunpack.c.l.b16 %v222
      %v374 = vunpack.c.l.b16 %v223
      %v375 = vunpack.c.l.b16 %v224
      %v376 = vunpack.c.l.b16 %v225
      %v377 = vpack.c.b16 %v346, %v345
      %v378 = vpack.c.b16 %v348, %v347
      %v379 = vpack.c.b16 %v350, %v349
      %v380 = vpack.c.b16 %v352, %v351
      %v381 = vpack.c.b16 %v354, %v353
      %v382 = vpack.c.b16 %v356, %v355
      %v383 = vpack.c.b16 %v358, %v357
      %v384 = vpack.c.b16 %v360, %v359
      %v385 = vpack.c.b16 %v362, %v361
      %v386 = vpack.c.b16 %v364, %v363
      %v387 = vpack.c.b16 %v366, %v365
      %v388 = vpack.c.b16 %v368, %v367
      %v389 = vpack.c.b16 %v370, %v369
      %v390 = vpack.c.b16 %v372, %v371
      %v391 = vpack.c.b16 %v374, %v373
      %v392 = vpack.c.b16 %v376, %v375
      %409 = vmatprep.subr.bf16.mxu0 0
      %410 = vmatpush1.bf16.msra.mxu0 %v384
      %411 = vmatprep.subr.bf16.mxu0 0
      %412 = vmatpush1.bf16.msra.mxu0 %v383
      %413 = vmatprep.subr.bf16.mxu0 0
      %414 = vmatpush1.bf16.msra.mxu0 %v382
      %415 = vmatprep.subr.bf16.mxu0 0
      %416 = vmatpush1.bf16.msra.mxu0 %v381
      %417 = vmatprep.subr.bf16.mxu0 0
      %418 = vmatpush1.bf16.msra.mxu0 %v380
      %419 = vmatprep.subr.bf16.mxu0 0
      %420 = vmatpush1.bf16.msra.mxu0 %v379
      %421 = vmatprep.subr.bf16.mxu0 0
      %422 = vmatpush1.bf16.msra.mxu0 %v378
      %423 = vmatprep.subr.bf16.mxu0 0
      %424 = vmatpush1.bf16.msra.mxu0 %v377
      %425 = vmatprep.subr.bf16.mxu0 0
      %426 = vmatpush2.bf16.msra.mxu0 %v392
      %427 = vmatprep.subr.bf16.mxu0 0
      %428 = vmatpush2.bf16.msra.mxu0 %v391
      %429 = vmatprep.subr.bf16.mxu0 0
      %430 = vmatpush2.bf16.msra.mxu0 %v390
      %431 = vmatprep.subr.bf16.mxu0 0
      %432 = vmatpush2.bf16.msra.mxu0 %v389
      %433 = vmatprep.subr.bf16.mxu0 0
      %434 = vmatpush2.bf16.msra.mxu0 %v388
      %435 = vmatprep.subr.bf16.mxu0 0
      %436 = vmatpush2.bf16.msra.mxu0 %v387
      %437 = vmatprep.subr.bf16.mxu0 0
      %438 = vmatpush2.bf16.msra.mxu0 %v386
      %439 = vmatprep.subr.bf16.mxu0 0
      %440 = vmatpush2.bf16.msra.mxu0 %v385
      %441 = vmatprep.mubr.bf16.mxu0 %v282
      %442 = vmatmul.mubr.bf16.gmra.mxu0 %v281
      %v443 = vpop.f32.mrf.mxu0
      %v444 = vadd.f32 %v231, %v443
      %v445 = vpop.f32.mrf.mxu0
      %v446 = vpop.f32.mrf.mxu0
      %v447 = vadd.f32 %v231, %v446
      %v448 = vpop.f32.mrf.mxu0
      %449 = vmatprep.mubr.bf16.mxu0 %v284
      %450 = vmatmul.mubr.bf16.gmra.mxu0 %v283
      %v451 = vpop.f32.mrf.mxu0
      %v452 = vadd.f32 %v231, %v451
      %v453 = vpop.f32.mrf.mxu0
      %v454 = vpop.f32.mrf.mxu0
      %v455 = vadd.f32 %v231, %v454
      %v456 = vpop.f32.mrf.mxu0
      %457 = vmatprep.mubr.bf16.mxu0 %v286
      %458 = vmatmul.mubr.bf16.gmra.mxu0 %v285
      %v459 = vpop.f32.mrf.mxu0
      %v460 = vadd.f32 %v231, %v459
      %v461 = vpop.f32.mrf.mxu0
      %v462 = vpop.f32.mrf.mxu0
      %v463 = vadd.f32 %v231, %v462
      %v464 = vpop.f32.mrf.mxu0
      %465 = vmatprep.mubr.bf16.mxu0 %v288
      %466 = vmatmul.mubr.bf16.gmra.mxu0 %v287
      %v467 = vpop.f32.mrf.mxu0
      %v468 = vadd.f32 %v231, %v467
      %v469 = vpop.f32.mrf.mxu0
      %v470 = vpop.f32.mrf.mxu0
      %v471 = vadd.f32 %v231, %v470
      %v472 = vpop.f32.mrf.mxu0
      %473 = vmatprep.mubr.bf16.mxu0 %v290
      %474 = vmatmul.mubr.bf16.gmra.mxu0 %v289
      %v475 = vpop.f32.mrf.mxu0
      %v476 = vadd.f32 %v231, %v475
      %v477 = vpop.f32.mrf.mxu0
      %v478 = vpop.f32.mrf.mxu0
      %v479 = vadd.f32 %v231, %v478
      %v480 = vpop.f32.mrf.mxu0
      %481 = vmatprep.mubr.bf16.mxu0 %v292
      %482 = vmatmul.mubr.bf16.gmra.mxu0 %v291
      %v483 = vpop.f32.mrf.mxu0
      %v484 = vadd.f32 %v231, %v483
      %v485 = vpop.f32.mrf.mxu0
      %v486 = vpop.f32.mrf.mxu0
      %v487 = vadd.f32 %v231, %v486
      %v488 = vpop.f32.mrf.mxu0
      %489 = vmatprep.mubr.bf16.mxu0 %v294
      %490 = vmatmul.mubr.bf16.gmra.mxu0 %v293
      %v491 = vpop.f32.mrf.mxu0
      %v492 = vadd.f32 %v231, %v491
      %v493 = vpop.f32.mrf.mxu0
      %v494 = vpop.f32.mrf.mxu0
      %v495 = vadd.f32 %v231, %v494
      %v496 = vpop.f32.mrf.mxu0
      %497 = vmatprep.mubr.bf16.mxu0 %v296
      %498 = vmatmul.mubr.bf16.gmra.mxu0 %v295
      %v499 = vpop.f32.mrf.mxu0
      %v500 = vadd.f32 %v231, %v499
      %v501 = vpop.f32.mrf.mxu0
      %v502 = vpop.f32.mrf.mxu0
      %v503 = vadd.f32 %v231, %v502
      %v504 = vpop.f32.mrf.mxu0
      %505 = vdwg.mxu0
      %v506 = vlaneseq
      %v507 = vand.u32 %v506, 127
      %v508 = vmax.f32 %v444, -100.0
      %v509 = vmax.f32 %v447, -100.0
      %v510 = vmax.f32 %v452, -100.0
      %v511 = vmax.f32 %v455, -100.0
      %v512 = vmax.f32 %v460, -100.0
      %v513 = vmax.f32 %v463, -100.0
      %v514 = vmax.f32 %v468, -100.0
      %v515 = vmax.f32 %v471, -100.0
      %v516 = vmax.f32 %v476, -100.0
      %v517 = vmax.f32 %v479, -100.0
      %v518 = vmax.f32 %v484, -100.0
      %v519 = vmax.f32 %v487, -100.0
      %v520 = vmax.f32 %v492, -100.0
      %v521 = vmax.f32 %v495, -100.0
      %v522 = vmax.f32 %v500, -100.0
      %v523 = vmax.f32 %v503, -100.0
      %v524 = vmin.f32 %v508, 100.0
      %v525 = vmin.f32 %v509, 100.0
      %v526 = vmin.f32 %v510, 100.0
      %v527 = vmin.f32 %v511, 100.0
      %v528 = vmin.f32 %v512, 100.0
      %v529 = vmin.f32 %v513, 100.0
      %v530 = vmin.f32 %v514, 100.0
      %v531 = vmin.f32 %v515, 100.0
      %v532 = vmin.f32 %v516, 100.0
      %v533 = vmin.f32 %v517, 100.0
      %v534 = vmin.f32 %v518, 100.0
      %v535 = vmin.f32 %v519, 100.0
      %v536 = vmin.f32 %v520, 100.0
      %v537 = vmin.f32 %v521, 100.0
      %v538 = vmin.f32 %v522, 100.0
      %v539 = vmin.f32 %v523, 100.0
      %vm540 = vcmp.gt.f32.partialorder %v444, 20.0
      %vm541 = vcmp.gt.f32.partialorder %v447, 20.0
      %vm542 = vcmp.gt.f32.partialorder %v452, 20.0
      %vm543 = vcmp.gt.f32.partialorder %v455, 20.0
      %vm544 = vcmp.gt.f32.partialorder %v460, 20.0
      %vm545 = vcmp.gt.f32.partialorder %v463, 20.0
      %vm546 = vcmp.gt.f32.partialorder %v468, 20.0
      %vm547 = vcmp.gt.f32.partialorder %v471, 20.0
      %vm548 = vcmp.gt.f32.partialorder %v476, 20.0
      %vm549 = vcmp.gt.f32.partialorder %v479, 20.0
      %vm550 = vcmp.gt.f32.partialorder %v484, 20.0
      %vm551 = vcmp.gt.f32.partialorder %v487, 20.0
      %vm552 = vcmp.gt.f32.partialorder %v492, 20.0
      %vm553 = vcmp.gt.f32.partialorder %v495, 20.0
      %vm554 = vcmp.gt.f32.partialorder %v500, 20.0
      %vm555 = vcmp.gt.f32.partialorder %v503, 20.0
      %v556 = vmin.f32 %v444, 20.0
      %v557 = vmin.f32 %v447, 20.0
      %v558 = vmin.f32 %v452, 20.0
      %v559 = vmin.f32 %v455, 20.0
      %v560 = vmin.f32 %v460, 20.0
      %v561 = vmin.f32 %v463, 20.0
      %v562 = vmin.f32 %v468, 20.0
      %v563 = vmin.f32 %v471, 20.0
      %v564 = vmin.f32 %v476, 20.0
      %v565 = vmin.f32 %v479, 20.0
      %v566 = vmin.f32 %v484, 20.0
      %v567 = vmin.f32 %v487, 20.0
      %v568 = vmin.f32 %v492, 20.0
      %v569 = vmin.f32 %v495, 20.0
      %v570 = vmin.f32 %v500, 20.0
      %v571 = vmin.f32 %v503, 20.0
      %v572 = vmul.f32 %v556, 1.442695
      %v573 = vpow.pop %v572
      %v574 = vmul.f32 %v557, 1.442695
      %v575 = vpow.pop %v574
      %v576 = vmul.f32 %v558, 1.442695
      %v577 = vpow.pop %v576
      %v578 = vmul.f32 %v559, 1.442695
      %v579 = vpow.pop %v578
      %v580 = vmul.f32 %v560, 1.442695
      %v581 = vpow.pop %v580
      %v582 = vmul.f32 %v561, 1.442695
      %v583 = vpow.pop %v582
      %v584 = vmul.f32 %v562, 1.442695
      %v585 = vpow.pop %v584
      %v586 = vmul.f32 %v563, 1.442695
      %v587 = vpow.pop %v586
      %v588 = vmul.f32 %v564, 1.442695
      %v589 = vpow.pop %v588
      %v590 = vmul.f32 %v565, 1.442695
      %v591 = vpow.pop %v590
      %v592 = vmul.f32 %v566, 1.442695
      %v593 = vpow.pop %v592
      %v594 = vmul.f32 %v567, 1.442695
      %v595 = vpow.pop %v594
      %v596 = vmul.f32 %v568, 1.442695
      %v597 = vpow.pop %v596
      %v598 = vmul.f32 %v569, 1.442695
      %v599 = vpow.pop %v598
      %v600 = vmul.f32 %v570, 1.442695
      %v601 = vpow.pop %v600
      %v602 = vmul.f32 %v571, 1.442695
      %v603 = vpow.pop %v602
      %v604 = vadd.f32 %v573, 1.0
      %v605 = vlog2.pop %v604
      %v606 = vmul.f32 %v605, 0.6931472
      %v607 = vmul.f32 -0.5, %v573
      %v608 = vadd.f32 %v607, 1.0
      %v609 = vmul.f32 %v608, %v573
      %v610 = vand.u32 2147483647, %v573
      %vm611 = vcmp.lt.f32.partialorder %v610, 0.0004427343
      %v612 = vsel %vm611, %v609, %v606
      %v613 = vadd.f32 %v575, 1.0
      %v614 = vlog2.pop %v613
      %v615 = vmul.f32 %v614, 0.6931472
      %v616 = vmul.f32 -0.5, %v575
      %v617 = vadd.f32 %v616, 1.0
      %v618 = vmul.f32 %v617, %v575
      %v619 = vand.u32 2147483647, %v575
      %vm620 = vcmp.lt.f32.partialorder %v619, 0.0004427343
      %v621 = vsel %vm620, %v618, %v615
      %v622 = vadd.f32 %v577, 1.0
      %v623 = vlog2.pop %v622
      %v624 = vmul.f32 %v623, 0.6931472
      %v625 = vmul.f32 -0.5, %v577
      %v626 = vadd.f32 %v625, 1.0
      %v627 = vmul.f32 %v626, %v577
      %v628 = vand.u32 2147483647, %v577
      %vm629 = vcmp.lt.f32.partialorder %v628, 0.0004427343
      %v630 = vsel %vm629, %v627, %v624
      %v631 = vadd.f32 %v579, 1.0
      %v632 = vlog2.pop %v631
      %v633 = vmul.f32 %v632, 0.6931472
      %v634 = vmul.f32 -0.5, %v579
      %v635 = vadd.f32 %v634, 1.0
      %v636 = vmul.f32 %v635, %v579
      %v637 = vand.u32 2147483647, %v579
      %vm638 = vcmp.lt.f32.partialorder %v637, 0.0004427343
      %v639 = vsel %vm638, %v636, %v633
      %v640 = vadd.f32 %v581, 1.0
      %v641 = vlog2.pop %v640
      %v642 = vmul.f32 %v641, 0.6931472
      %v643 = vmul.f32 -0.5, %v581
      %v644 = vadd.f32 %v643, 1.0
      %v645 = vmul.f32 %v644, %v581
      %v646 = vand.u32 2147483647, %v581
      %vm647 = vcmp.lt.f32.partialorder %v646, 0.0004427343
      %v648 = vsel %vm647, %v645, %v642
      %v649 = vadd.f32 %v583, 1.0
      %v650 = vlog2.pop %v649
      %v651 = vmul.f32 %v650, 0.6931472
      %v652 = vmul.f32 -0.5, %v583
      %v653 = vadd.f32 %v652, 1.0
      %v654 = vmul.f32 %v653, %v583
      %v655 = vand.u32 2147483647, %v583
      %vm656 = vcmp.lt.f32.partialorder %v655, 0.0004427343
      %v657 = vsel %vm656, %v654, %v651
      %v658 = vadd.f32 %v585, 1.0
      %v659 = vlog2.pop %v658
      %v660 = vmul.f32 %v659, 0.6931472
      %v661 = vmul.f32 -0.5, %v585
      %v662 = vadd.f32 %v661, 1.0
      %v663 = vmul.f32 %v662, %v585
      %v664 = vand.u32 2147483647, %v585
      %vm665 = vcmp.lt.f32.partialorder %v664, 0.0004427343
      %v666 = vsel %vm665, %v663, %v660
      %v667 = vadd.f32 %v587, 1.0
      %v668 = vlog2.pop %v667
      %v669 = vmul.f32 %v668, 0.6931472
      %v670 = vmul.f32 -0.5, %v587
      %v671 = vadd.f32 %v670, 1.0
      %v672 = vmul.f32 %v671, %v587
      %v673 = vand.u32 2147483647, %v587
      %vm674 = vcmp.lt.f32.partialorder %v673, 0.0004427343
      %v675 = vsel %vm674, %v672, %v669
      %v676 = vadd.f32 %v589, 1.0
      %v677 = vlog2.pop %v676
      %v678 = vmul.f32 %v677, 0.6931472
      %v679 = vmul.f32 -0.5, %v589
      %v680 = vadd.f32 %v679, 1.0
      %v681 = vmul.f32 %v680, %v589
      %v682 = vand.u32 2147483647, %v589
      %vm683 = vcmp.lt.f32.partialorder %v682, 0.0004427343
      %v684 = vsel %vm683, %v681, %v678
      %v685 = vadd.f32 %v591, 1.0
      %v686 = vlog2.pop %v685
      %v687 = vmul.f32 %v686, 0.6931472
      %v688 = vmul.f32 -0.5, %v591
      %v689 = vadd.f32 %v688, 1.0
      %v690 = vmul.f32 %v689, %v591
      %v691 = vand.u32 2147483647, %v591
      %vm692 = vcmp.lt.f32.partialorder %v691, 0.0004427343
      %v693 = vsel %vm692, %v690, %v687
      %v694 = vadd.f32 %v593, 1.0
      %v695 = vlog2.pop %v694
      %v696 = vmul.f32 %v695, 0.6931472
      %v697 = vmul.f32 -0.5, %v593
      %v698 = vadd.f32 %v697, 1.0
      %v699 = vmul.f32 %v698, %v593
      %v700 = vand.u32 2147483647, %v593
      %vm701 = vcmp.lt.f32.partialorder %v700, 0.0004427343
      %v702 = vsel %vm701, %v699, %v696
      %v703 = vadd.f32 %v595, 1.0
      %v704 = vlog2.pop %v703
      %v705 = vmul.f32 %v704, 0.6931472
      %v706 = vmul.f32 -0.5, %v595
      %v707 = vadd.f32 %v706, 1.0
      %v708 = vmul.f32 %v707, %v595
      %v709 = vand.u32 2147483647, %v595
      %vm710 = vcmp.lt.f32.partialorder %v709, 0.0004427343
      %v711 = vsel %vm710, %v708, %v705
      %v712 = vadd.f32 %v597, 1.0
      %v713 = vlog2.pop %v712
      %v714 = vmul.f32 %v713, 0.6931472
      %v715 = vmul.f32 -0.5, %v597
      %v716 = vadd.f32 %v715, 1.0
      %v717 = vmul.f32 %v716, %v597
      %v718 = vand.u32 2147483647, %v597
      %vm719 = vcmp.lt.f32.partialorder %v718, 0.0004427343
      %v720 = vsel %vm719, %v717, %v714
      %v721 = vadd.f32 %v599, 1.0
      %v722 = vlog2.pop %v721
      %v723 = vmul.f32 %v722, 0.6931472
      %v724 = vmul.f32 -0.5, %v599
      %v725 = vadd.f32 %v724, 1.0
      %v726 = vmul.f32 %v725, %v599
      %v727 = vand.u32 2147483647, %v599
      %vm728 = vcmp.lt.f32.partialorder %v727, 0.0004427343
      %v729 = vsel %vm728, %v726, %v723
      %v730 = vadd.f32 %v601, 1.0
      %v731 = vlog2.pop %v730
      %v732 = vmul.f32 %v731, 0.6931472
      %v733 = vmul.f32 -0.5, %v601
      %v734 = vadd.f32 %v733, 1.0
      %v735 = vmul.f32 %v734, %v601
      %v736 = vand.u32 2147483647, %v601
      %vm737 = vcmp.lt.f32.partialorder %v736, 0.0004427343
      %v738 = vsel %vm737, %v735, %v732
      %v739 = vadd.f32 %v603, 1.0
      %v740 = vlog2.pop %v739
      %v741 = vmul.f32 %v740, 0.6931472
      %v742 = vmul.f32 -0.5, %v603
      %v743 = vadd.f32 %v742, 1.0
      %v744 = vmul.f32 %v743, %v603
      %v745 = vand.u32 2147483647, %v603
      %vm746 = vcmp.lt.f32.partialorder %v745, 0.0004427343
      %v747 = vsel %vm746, %v744, %v741
      %v748 = vsel %vm540, %v444, %v612
      %v749 = vsel %vm541, %v447, %v621
      %v750 = vsel %vm542, %v452, %v630
      %v751 = vsel %vm543, %v455, %v639
      %v752 = vsel %vm544, %v460, %v648
      %v753 = vsel %vm545, %v463, %v657
      %v754 = vsel %vm546, %v468, %v666
      %v755 = vsel %vm547, %v471, %v675
      %v756 = vsel %vm548, %v476, %v684
      %v757 = vsel %vm549, %v479, %v693
      %v758 = vsel %vm550, %v484, %v702
      %v759 = vsel %vm551, %v487, %v711
      %v760 = vsel %vm552, %v492, %v720
      %v761 = vsel %vm553, %v495, %v729
      %v762 = vsel %vm554, %v500, %v738
      %v763 = vsel %vm555, %v503, %v747
      %v764 = vadd.f32 %v748, 0.001
      %v765 = vadd.f32 %v749, 0.001
      %v766 = vadd.f32 %v750, 0.001
      %v767 = vadd.f32 %v751, 0.001
      %v768 = vadd.f32 %v752, 0.001
      %v769 = vadd.f32 %v753, 0.001
      %v770 = vadd.f32 %v754, 0.001
      %v771 = vadd.f32 %v755, 0.001
      %v772 = vadd.f32 %v756, 0.001
      %v773 = vadd.f32 %v757, 0.001
      %v774 = vadd.f32 %v758, 0.001
      %v775 = vadd.f32 %v759, 0.001
      %v776 = vadd.f32 %v760, 0.001
      %v777 = vadd.f32 %v761, 0.001
      %v778 = vadd.f32 %v762, 0.001
      %v779 = vadd.f32 %v763, 0.001
      %v780 = vmin.f32 %v764, 100.0
      %v781 = vmin.f32 %v765, 100.0
      %v782 = vmin.f32 %v766, 100.0
      %v783 = vmin.f32 %v767, 100.0
      %v784 = vmin.f32 %v768, 100.0
      %v785 = vmin.f32 %v769, 100.0
      %v786 = vmin.f32 %v770, 100.0
      %v787 = vmin.f32 %v771, 100.0
      %v788 = vmin.f32 %v772, 100.0
      %v789 = vmin.f32 %v773, 100.0
      %v790 = vmin.f32 %v774, 100.0
      %v791 = vmin.f32 %v775, 100.0
      %v792 = vmin.f32 %v776, 100.0
      %v793 = vmin.f32 %v777, 100.0
      %v794 = vmin.f32 %v778, 100.0
      %v795 = vmin.f32 %v779, 100.0
      %vm796 = vcmp.lt.s32.totalorder %v507, 64
      %v797 = vsel %vm796, %v524, %v780
      %v798 = vsel %vm796, %v525, %v781
      %v799 = vsel %vm796, %v526, %v782
      %v800 = vsel %vm796, %v527, %v783
      %v801 = vsel %vm796, %v528, %v784
      %v802 = vsel %vm796, %v529, %v785
      %v803 = vsel %vm796, %v530, %v786
      %v804 = vsel %vm796, %v531, %v787
      %v805 = vsel %vm796, %v532, %v788
      %v806 = vsel %vm796, %v533, %v789
      %v807 = vsel %vm796, %v534, %v790
      %v808 = vsel %vm796, %v535, %v791
      %v809 = vsel %vm796, %v536, %v792
      %v810 = vsel %vm796, %v537, %v793
      %v811 = vsel %vm796, %v538, %v794
      %v812 = vsel %vm796, %v539, %v795
      %813 = vst [vmem:[%s175] sm:$0xff] %v797
      %814 = vst [vmem:[%s175 + $0x8] sm:$0xff] %v798
      %815 = vst [vmem:[%s175 + $0x10] sm:$0xff] %v799
      %816 = vst [vmem:[%s175 + $0x18] sm:$0xff] %v800
      %817 = vst [vmem:[%s175 + $0x20] sm:$0xff] %v801
      %818 = vst [vmem:[%s175 + $0x28] sm:$0xff] %v802
      %819 = vst [vmem:[%s175 + $0x30] sm:$0xff] %v803
      %820 = vst [vmem:[%s175 + $0x38] sm:$0xff] %v804
      %821 = vst [vmem:[%s175 + $0x40] sm:$0xff] %v805
      %822 = vst [vmem:[%s175 + $0x48] sm:$0xff] %v806
      %823 = vst [vmem:[%s175 + $0x50] sm:$0xff] %v807
      %824 = vst [vmem:[%s175 + $0x58] sm:$0xff] %v808
      %825 = vst [vmem:[%s175 + $0x60] sm:$0xff] %v809
      %826 = vst [vmem:[%s175 + $0x68] sm:$0xff] %v810
      %827 = vst [vmem:[%s175 + $0x70] sm:$0xff] %v811
      %828 = vst [vmem:[%s175 + $0x78] sm:$0xff] %v812
      %s829 = smul.u32 16, %s14
      %p830 = scmp.lt.s32.totalorder %s829, 31
      %s831 = scalar_select %p830, %s829, 31
      %s832 = smul.addr %s831, 8
      %s833 = scalar_lea.vmem %s3, %s832
      // Predicated region
      $region33: #{diag_gcn_net.1} parent=31 // pred_check
        %p834 = pneg %p100
      $region34: #{diag_gcn_net.1} parent=31 // pred_check_branch
        %836 = sbr.rel (%p834) target = $region36
      $region35: #{diag_gcn_net.1} parent=31 // pred_region
        %s837 = smul.u32 16, %s14
      $region36: #{diag_gcn_net.1} parent=31 // pred_fallthru
        _
    $region32: #{diag_gcn_net.1} parent=5 // pred_fallthru
      _
    %p838 = scmp.le.s32.totalorder 2, %s9
    // Predicated region
    $region37: #{diag_gcn_net.1} parent=5 // pred_check
      %p839 = pneg %p838
    $region38: #{diag_gcn_net.1} parent=5 // pred_check_branch
      %841 = sbr.rel (%p839) target = $region40
    $region39: #{diag_gcn_net.1} parent=5 // pred_region
      %s842 = ssub.s32 %s9, 2
      // Predicated region
      $region41: #{diag_gcn_net.1} parent=39 // pred_check
        %p843 = pneg %p106
      $region42: #{diag_gcn_net.1} parent=39 // pred_check_branch
        %845 = sbr.rel (%p843) target = $region44
      $region43: #{diag_gcn_net.1} parent=39 // pred_region
        %s846 = smul.u32 16, %s15
        %p847 = scmp.lt.s32.totalorder %s846, 31
        %s848 = scalar_select %p847, %s846, 31
        %s849 = smul.addr %s848, 8
        %s850 = scalar_lea.vmem %s3, %s849
      $region44: #{diag_gcn_net.1} parent=39 // pred_fallthru
        _
    $region40: #{diag_gcn_net.1} parent=5 // pred_fallthru
      _
  $region6: #{diag_gcn_net.1} parent=0 // loop_footer
    %s13 = sadd.s32 1, %s9
  $region7: #{diag_gcn_net.1} parent=0 // loop_footer_branch
    %8 = sbr.rel target = $region3
  $region8: #{diag_gcn_net.1} parent=0 // loop_exit
    _

</llo_original>
